<compile_context>
chip_gen: v7x
topology: tpu7x:2x2x1
jax: 0.10.0
libtpu: 0.0.40
codegen_flags: <defaults>
</compile_context>

<pallas_src>
import functools

import jax
import jax.numpy as jnp
from jax import lax
from jax.experimental import pallas as pl
from jax.experimental.pallas import tpu as pltpu


# --------------------------------------------------------------------------
# Kernels
# --------------------------------------------------------------------------
def _apply_dtype(dtype):
    # bf16 full-tile apply: packed bf16 VALU on v6e/v7x, half the vreg traffic.
    return jnp.bfloat16 if jnp.dtype(dtype) == jnp.dtype(jnp.bfloat16) else jnp.float32


def _revin_norm_kernel(x_ref, w_ref, b_ref, y_ref, mean_ref, std_ref, *, eps):
    # x block: (TB, L, C).  Reduction over L in f32 for accuracy.
    x = x_ref[...]
    xf = x.astype(jnp.float32)                               # (TB, L, C)
    mean = jnp.mean(xf, axis=1, keepdims=True)               # (TB, 1, C)
    xc = xf - mean
    var = jnp.mean(xc * xc, axis=1, keepdims=True)           # biased variance
    inv_std = lax.rsqrt(var + eps)                           # EUP, tiny tensor
    std = (var + eps) * inv_std                              # == sqrt(var+eps)

    # Fold affine into per-channel scale/shift on the tiny stats tensors.
    w = w_ref[...].astype(jnp.float32)[:, None, :]           # (1, 1, C)
    b = b_ref[...].astype(jnp.float32)[:, None, :]           # (1, 1, C)
    scale = inv_std * w                                      # (TB, 1, C)
    shift = b - mean * scale                                 # (TB, 1, C)

    adt = _apply_dtype(x_ref.dtype)
    y = x.astype(adt) * scale.astype(adt) + shift.astype(adt)
    y_ref[...] = y.astype(y_ref.dtype)
    mean_ref[...] = mean.astype(mean_ref.dtype)
    std_ref[...] = std.astype(std_ref.dtype)


def _revin_norm_no_update_kernel(x_ref, mean_ref, std_ref, w_ref, b_ref, y_ref):
    # 'norm_no_update': normalize with precomputed stats.  Pure scale+shift.
    mean = mean_ref[...].astype(jnp.float32)                 # (TB, 1, C)
    std = std_ref[...].astype(jnp.float32)                   # (TB, 1, C)
    w = w_ref[...].astype(jnp.float32)[:, None, :]           # (1, 1, C)
    b = b_ref[...].astype(jnp.float32)[:, None, :]

    scale = w / std                                          # tiny (TB,1,C)
    shift = b - mean * scale
    adt = _apply_dtype(x_ref.dtype)
    y_ref[...] = (x_ref[...].astype(adt) * scale.astype(adt)
                  + shift.astype(adt)).astype(y_ref.dtype)


def _revin_denorm_kernel(x_ref, mean_ref, std_ref, w_ref, b_ref, y_ref, *, eps):
    # PyTorch: y = ((x - b) / (w + eps^2)) * std + mean
    # Folded : scale = std / (w + eps^2); shift = mean - b*scale; y = x*scale + shift
    mean = mean_ref[...].astype(jnp.float32)
    std = std_ref[...].astype(jnp.float32)
    w = w_ref[...].astype(jnp.float32)[:, None, :]
    b = b_ref[...].astype(jnp.float32)[:, None, :]

    scale = std / (w + eps * eps)                            # tiny (TB,1,C)
    shift = mean - b * scale
    adt = _apply_dtype(x_ref.dtype)
    y_ref[...] = (x_ref[...].astype(adt) * scale.astype(adt)
                  + shift.astype(adt)).astype(y_ref.dtype)


# --------------------------------------------------------------------------
# Tiling / VMEM helpers
# --------------------------------------------------------------------------
_TARGET_TILE_BYTES = 8 << 20        # per-grid-step working set target
_MIN_SPLIT_TILE_BYTES = 1 << 20     # don't shrink tiles below this just to get >=2 steps


def _pick_block_batch(B, L, C, ws_per_elem, target_bytes=_TARGET_TILE_BYTES):
    """Largest batch tile whose working set fits `target_bytes`.  Prefers >=2
    grid steps (v7x megacore sharding) only when tiles stay >= 1 MiB; on
    single-TC v5e/v6e the biggest tile wins.  Remainders handled via cdiv."""
    per_batch = max(1, L * C * ws_per_elem)
    tb = max(1, min(B, target_bytes // per_batch))
    if tb >= B and B >= 2:
        half = (B + 1) // 2
        if half * per_batch >= _MIN_SPLIT_TILE_BYTES:
            tb = half
    return int(tb)


def _pick_block_len(L, C, ws_per_elem, target_bytes=_TARGET_TILE_BYTES):
    """L tile (multiple of 8, or full L) so a (1, tl, C) working set fits."""
    per_row = max(1, C * ws_per_elem)
    tl = (target_bytes // per_row) // 8 * 8
    tl = max(8, min(L, tl))
    return int(L if tl >= L else tl)


def _vmem_limit_bytes(io_tile_bytes, tmp_tile_bytes):
    try:
        cap = int(getattr(pltpu.get_tpu_info(), "vmem_capacity_bytes", 64 << 20))
    except Exception:  # not on TPU / API unavailable
        cap = 64 << 20
    # Cap at 48 MiB: leaves headroom under v7x's 64 MiB VMEM for compiler
    # scratch; floor at 16 MiB (v5e default scoped limit).
    hard_cap = min(48 << 20, (cap * 3) // 4)
    want = 2 * io_tile_bytes + tmp_tile_bytes + (4 << 20)   # dbl-buffered IO + temps
    return int(min(hard_cap, max(16 << 20, want)))


def _compiler_params(dim_sem, io_tile_bytes, tmp_tile_bytes):
    return pltpu.CompilerParams(
        dimension_semantics=dim_sem,
        vmem_limit_bytes=_vmem_limit_bytes(io_tile_bytes, tmp_tile_bytes),
    )


# --------------------------------------------------------------------------
# Wrappers
# --------------------------------------------------------------------------
def revin_norm(x, affine_weight, affine_bias, eps=1e-5, block_batch=None):
    """mode='norm': returns (x_normalized, mean, stdev). Stats are float32."""
    B, L, C = x.shape
    itemsize = jnp.dtype(x.dtype).itemsize
    # Working set per element: in + out tiles + ~2 f32 temps for the reduction.
    ws_per_elem = 2 * itemsize + 8
    tb = int(block_batch) if block_batch else _pick_block_batch(B, L, C, ws_per_elem)
    io_tile = 2 * tb * L * C * itemsize
    tmp_tile = 2 * tb * L * C * 4
    w2 = affine_weight.reshape(1, C).astype(jnp.float32)
    b2 = affine_bias.reshape(1, C).astype(jnp.float32)

    kernel = functools.partial(_revin_norm_kernel, eps=eps)
    y, mean, std = pl.pallas_call(
        kernel,
        out_shape=(
            jax.ShapeDtypeStruct((B, L, C), x.dtype),
            jax.ShapeDtypeStruct((B, 1, C), jnp.float32),
            jax.ShapeDtypeStruct((B, 1, C), jnp.float32),
        ),
        grid_spec=pltpu.PrefetchScalarGridSpec(
            num_scalar_prefetch=0,
            grid=(pl.cdiv(B, tb),),
            in_specs=[
                pl.BlockSpec((tb, L, C), lambda i: (i, 0, 0)),
                pl.BlockSpec((1, C), lambda i: (0, 0)),
                pl.BlockSpec((1, C), lambda i: (0, 0)),
            ],
            out_specs=[
                pl.BlockSpec((tb, L, C), lambda i: (i, 0, 0)),
                pl.BlockSpec((tb, 1, C), lambda i: (i, 0, 0)),
                pl.BlockSpec((tb, 1, C), lambda i: (i, 0, 0)),
            ],
        ),
        compiler_params=_compiler_params(("parallel",), io_tile, tmp_tile),
    )(x, w2, b2)
    return y, mean, std


def _revin_apply(kernel, x, mean, std, affine_weight, affine_bias,
                 block_batch=None, block_len=None):
    """Shared wrapper for the pure scale+shift modes (norm_no_update/denorm)."""
    B, L, C = x.shape
    itemsize = jnp.dtype(x.dtype).itemsize
    ws_per_elem = 2 * itemsize + 4
    tb = int(block_batch) if block_batch else _pick_block_batch(B, L, C, ws_per_elem)
    if block_len is not None:
        tl = int(block_len)
    elif tb == 1 and L * C * ws_per_elem > _TARGET_TILE_BYTES:
        # Small-B / very long L: tile along L as well (no reduction here).
        tl = _pick_block_len(L, C, ws_per_elem)
    else:
        tl = L
    io_tile = 2 * tb * tl * C * itemsize
    tmp_tile = tb * tl * C * 4
    w2 = affine_weight.reshape(1, C).astype(jnp.float32)
    b2 = affine_bias.reshape(1, C).astype(jnp.float32)

    y = pl.pallas_call(
        kernel,
        out_shape=jax.ShapeDtypeStruct((B, L, C), x.dtype),
        grid_spec=pltpu.PrefetchScalarGridSpec(
            num_scalar_prefetch=0,
            grid=(pl.cdiv(B, tb), pl.cdiv(L, tl)),
            in_specs=[
                pl.BlockSpec((tb, tl, C), lambda i, j: (i, j, 0)),
                pl.BlockSpec((tb, 1, C), lambda i, j: (i, 0, 0)),
                pl.BlockSpec((tb, 1, C), lambda i, j: (i, 0, 0)),
                pl.BlockSpec((1, C), lambda i, j: (0, 0)),
                pl.BlockSpec((1, C), lambda i, j: (0, 0)),
            ],
            out_specs=pl.BlockSpec((tb, tl, C), lambda i, j: (i, j, 0)),
        ),
        compiler_params=_compiler_params(("parallel", "parallel"),
                                         io_tile, tmp_tile),
    )(x, mean, std, w2, b2)
    return y


def revin_norm_no_update(x, mean, std, affine_weight, affine_bias,
                         block_batch=None, block_len=None):
    """mode='norm_no_update': normalize with previously computed statistics."""
    return _revin_apply(_revin_norm_no_update_kernel, x, mean, std,
                        affine_weight, affine_bias, block_batch, block_len)


def revin_denorm(x, mean, std, affine_weight, affine_bias, eps=1e-5,
                 block_batch=None, block_len=None):
    """mode='denorm': inverse of revin_norm given saved statistics."""
    kernel = functools.partial(_revin_denorm_kernel, eps=eps)
    return _revin_apply(kernel, x, mean, std, affine_weight, affine_bias,
                        block_batch, block_len)


# --------------------------------------------------------------------------
# Reference (plain JAX, mirrors PyTorch semantics)
# --------------------------------------------------------------------------
def revin_norm_ref(x, w, b, eps=1e-5):
    mean = jnp.mean(x, axis=1, keepdims=True)
    var = jnp.var(x, axis=1, keepdims=True)          # unbiased=False
    std = jnp.sqrt(var + eps)
    y = (x - mean) / std
    y = y * w + b
    return y, mean, std


def revin_denorm_ref(x, mean, std, w, b, eps=1e-5):
    y = x - b
    y = y / (w + eps * eps)
    y = y * std
    y = y + mean
    return y


# --------------------------------------------------------------------------
if __name__ == "__main__":
    key = jax.random.PRNGKey(0)
    B, L, C = 4, 32, 8          # batch, seq_len, num_features
    eps = 1e-5

    x = jax.random.normal(key, (B, L, C), dtype=jnp.float32) * 3.0 + 1.5

    # Parameters as in RevIN._init_params (deterministic)
    affine_weight = jnp.ones((C,), dtype=jnp.float32)
    affine_bias = jnp.zeros((C,), dtype=jnp.float32)

    # mode='norm'
    y, mean, std = revin_norm(x, affine_weight, affine_bias, eps=eps)
    jax.block_until_ready((y, mean, std))

    # mode='norm_no_update'
    y2 = revin_norm_no_update(x, mean, std, affine_weight, affine_bias)
    jax.block_until_ready(y2)

    # mode='denorm'
    x_rec = revin_denorm(y, mean, std, affine_weight, affine_bias, eps=eps)
    jax.block_until_ready(x_rec)

    # Reference
    y_ref, mean_r, std_r = revin_norm_ref(x, affine_weight, affine_bias, eps)
    x_rec_ref = revin_denorm_ref(y_ref, mean_r, std_r, affine_weight,
                                 affine_bias, eps)

    assert jnp.allclose(y, y_ref, atol=1e-5, rtol=1e-5)
    assert jnp.allclose(mean, mean_r, atol=1e-5, rtol=1e-5)
    assert jnp.allclose(std, std_r, atol=1e-5, rtol=1e-5)
    assert jnp.allclose(y2, y_ref, atol=1e-5, rtol=1e-5)
    assert jnp.allclose(x_rec, x_rec_ref, atol=1e-5, rtol=1e-5)
    assert jnp.allclose(x_rec, x, atol=1e-3, rtol=1e-3)  # round-trip

    # Extra coverage: non-divisible block_batch (cdiv + edge-block padding)
    y_nb, mean_nb, std_nb = revin_norm(x, affine_weight, affine_bias, eps=eps,
                                       block_batch=3)
    jax.block_until_ready(y_nb)
    assert jnp.allclose(y_nb, y_ref, atol=1e-5, rtol=1e-5)
    assert jnp.allclose(mean_nb, mean_r, atol=1e-5, rtol=1e-5)

    # Extra coverage: 2-D (batch, L) grid on the apply kernels
    x_rec_lt = revin_denorm(y, mean, std, affine_weight, affine_bias, eps=eps,
                            block_batch=1, block_len=8)
    jax.block_until_ready(x_rec_lt)
    assert jnp.allclose(x_rec_lt, x_rec_ref, atol=1e-5, rtol=1e-5)

    # Extra coverage: bf16 path (f32 stats, bf16 full-tile apply)
    x_bf = x.astype(jnp.bfloat16)
    y_bf, mean_bf, std_bf = revin_norm(x_bf, affine_weight, affine_bias, eps=eps)
    jax.block_until_ready(y_bf)
    assert jnp.allclose(y_bf.astype(jnp.float32), y_ref, atol=6e-2, rtol=6e-2)

    print("KERNEL_OK")
</pallas_src>

<mosaic_0001>
module attributes {stable_mosaic.version = 11 : i64} {
  func.func @_revin_norm_kernel(%arg0: i32, %arg1: memref<4x32x8xf32, #tpu.memory_space<vmem>>, %arg2: memref<1x8xf32, #tpu.memory_space<vmem>>, %arg3: memref<1x8xf32, #tpu.memory_space<vmem>>, %arg4: memref<4x32x8xf32, #tpu.memory_space<vmem>>, %arg5: memref<4x1x8xf32, #tpu.memory_space<vmem>>, %arg6: memref<4x1x8xf32, #tpu.memory_space<vmem>>) attributes {dimension_semantics = [#tpu.dimension_semantics<parallel>], iteration_bounds = array<i64: 1>, scalar_prefetch = 0 : i64, scratch_operands = 0 : i64, tpu.core_type = #tpu.core_type<tc>, window_params = [{transform_indices = @transform_0, window_bounds = array<i64: 4, 32, 8>}, {pipeline_mode = #tpu.pipeline_mode<synchronous>, transform_indices = @transform_1, window_bounds = array<i64: 1, 8>}, {pipeline_mode = #tpu.pipeline_mode<synchronous>, transform_indices = @transform_2, window_bounds = array<i64: 1, 8>}, {transform_indices = @transform_3, window_bounds = array<i64: 4, 32, 8>}, {transform_indices = @transform_4, window_bounds = array<i64: 4, 1, 8>}, {transform_indices = @transform_5, window_bounds = array<i64: 4, 1, 8>}]} {
    %c0 = arith.constant 0 : index
    %c0_0 = arith.constant 0 : index
    %c0_1 = arith.constant 0 : index
    %0 = vector.load %arg1[%c0, %c0_0, %c0_1] : memref<4x32x8xf32, #tpu.memory_space<vmem>>, vector<4x32x8xf32>
    %cst = arith.constant dense<0.000000e+00> : vector<4x8xf32>
    %1 = vector.multi_reduction <add>, %0, %cst [1] : vector<4x32x8xf32> to vector<4x8xf32>
    %2 = vector.shape_cast %1 : vector<4x8xf32> to vector<4x1x8xf32>
    %cst_2 = arith.constant 3.200000e+01 : f32
    %3 = vector.broadcast %cst_2 : f32 to vector<4x1x8xf32>
    %4 = arith.divf %2, %3 : vector<4x1x8xf32>
    %5 = vector.broadcast %4 : vector<4x1x8xf32> to vector<4x32x8xf32>
    %6 = arith.subf %0, %5 : vector<4x32x8xf32>
    %7 = arith.mulf %6, %6 : vector<4x32x8xf32>
    %cst_3 = arith.constant dense<0.000000e+00> : vector<4x8xf32>
    %8 = vector.multi_reduction <add>, %7, %cst_3 [1] : vector<4x32x8xf32> to vector<4x8xf32>
    %9 = vector.shape_cast %8 : vector<4x8xf32> to vector<4x1x8xf32>
    %cst_4 = arith.constant 3.200000e+01 : f32
    %10 = vector.broadcast %cst_4 : f32 to vector<4x1x8xf32>
    %11 = arith.divf %9, %10 : vector<4x1x8xf32>
    %cst_5 = arith.constant 9.99999974E-6 : f32
    %12 = vector.broadcast %cst_5 : f32 to vector<4x1x8xf32>
    %13 = arith.addf %11, %12 : vector<4x1x8xf32>
    %14 = math.rsqrt %13 : vector<4x1x8xf32>
    %cst_6 = arith.constant 9.99999974E-6 : f32
    %15 = vector.broadcast %cst_6 : f32 to vector<4x1x8xf32>
    %16 = arith.addf %11, %15 : vector<4x1x8xf32>
    %17 = arith.mulf %16, %14 : vector<4x1x8xf32>
    %c0_7 = arith.constant 0 : index
    %c0_8 = arith.constant 0 : index
    %18 = vector.load %arg2[%c0_7, %c0_8] : memref<1x8xf32, #tpu.memory_space<vmem>>, vector<1x8xf32>
    %19 = vector.shape_cast %18 : vector<1x8xf32> to vector<1x1x8xf32>
    %c0_9 = arith.constant 0 : index
    %c0_10 = arith.constant 0 : index
    %20 = vector.load %arg3[%c0_9, %c0_10] : memref<1x8xf32, #tpu.memory_space<vmem>>, vector<1x8xf32>
    %21 = vector.shape_cast %20 : vector<1x8xf32> to vector<1x1x8xf32>
    %22 = vector.broadcast %19 : vector<1x1x8xf32> to vector<4x1x8xf32>
    %23 = arith.mulf %14, %22 : vector<4x1x8xf32>
    %24 = arith.mulf %4, %23 : vector<4x1x8xf32>
    %25 = vector.broadcast %21 : vector<1x1x8xf32> to vector<4x1x8xf32>
    %26 = arith.subf %25, %24 : vector<4x1x8xf32>
    %27 = vector.broadcast %23 : vector<4x1x8xf32> to vector<4x32x8xf32>
    %28 = arith.mulf %0, %27 : vector<4x32x8xf32>
    %29 = vector.broadcast %26 : vector<4x1x8xf32> to vector<4x32x8xf32>
    %30 = arith.addf %28, %29 : vector<4x32x8xf32>
    %c0_11 = arith.constant 0 : index
    %c0_12 = arith.constant 0 : index
    %c0_13 = arith.constant 0 : index
    %31 = vector.load %arg4[%c0_11, %c0_12, %c0_13] : memref<4x32x8xf32, #tpu.memory_space<vmem>>, vector<4x32x8xf32>
    tpu.vector_store %arg4[%c0_11, %c0_12, %c0_13], %30 {strides = array<i32>} : memref<4x32x8xf32, #tpu.memory_space<vmem>>, vector<4x32x8xf32>,
    %c0_14 = arith.constant 0 : index
    %c0_15 = arith.constant 0 : index
    %c0_16 = arith.constant 0 : index
    %32 = vector.load %arg5[%c0_14, %c0_15, %c0_16] : memref<4x1x8xf32, #tpu.memory_space<vmem>>, vector<4x1x8xf32>
    tpu.vector_store %arg5[%c0_14, %c0_15, %c0_16], %4 {strides = array<i32>} : memref<4x1x8xf32, #tpu.memory_space<vmem>>, vector<4x1x8xf32>,
    %c0_17 = arith.constant 0 : index
    %c0_18 = arith.constant 0 : index
    %c0_19 = arith.constant 0 : index
    %33 = vector.load %arg6[%c0_17, %c0_18, %c0_19] : memref<4x1x8xf32, #tpu.memory_space<vmem>>, vector<4x1x8xf32>
    tpu.vector_store %arg6[%c0_17, %c0_18, %c0_19], %17 {strides = array<i32>} : memref<4x1x8xf32, #tpu.memory_space<vmem>>, vector<4x1x8xf32>,
    return
  }
  func.func @transform_0(%arg0: i32) -> (i32, i32, i32) {
    %c0_i32 = arith.constant 0 : i32
    %c0_i32_0 = arith.constant 0 : i32
    %c0_i32_1 = arith.constant 0 : i32
    return %arg0, %c0_i32, %c0_i32_0 : i32, i32, i32
  }
  func.func @transform_1(%arg0: i32) -> (i32, i32) {
    %c0_i32 = arith.constant 0 : i32
    %c0_i32_0 = arith.constant 0 : i32
    %c0_i32_1 = arith.constant 0 : i32
    return %c0_i32, %c0_i32_0 : i32, i32
  }
  func.func @transform_2(%arg0: i32) -> (i32, i32) {
    %c0_i32 = arith.constant 0 : i32
    %c0_i32_0 = arith.constant 0 : i32
    %c0_i32_1 = arith.constant 0 : i32
    return %c0_i32, %c0_i32_0 : i32, i32
  }
  func.func @transform_3(%arg0: i32) -> (i32, i32, i32) {
    %c0_i32 = arith.constant 0 : i32
    %c0_i32_0 = arith.constant 0 : i32
    %c0_i32_1 = arith.constant 0 : i32
    return %arg0, %c0_i32, %c0_i32_0 : i32, i32, i32
  }
  func.func @transform_4(%arg0: i32) -> (i32, i32, i32) {
    %c0_i32 = arith.constant 0 : i32
    %c0_i32_0 = arith.constant 0 : i32
    %c0_i32_1 = arith.constant 0 : i32
    return %arg0, %c0_i32, %c0_i32_0 : i32, i32, i32
  }
  func.func @transform_5(%arg0: i32) -> (i32, i32, i32) {
    %c0_i32 = arith.constant 0 : i32
    %c0_i32_0 = arith.constant 0 : i32
    %c0_i32_1 = arith.constant 0 : i32
    return %arg0, %c0_i32, %c0_i32_0 : i32, i32, i32
  }
}

</mosaic_0001>

<llo_original>
// kernel: tpu_custom_call.1
$region0: #{tpu_custom_call.1}
  #allocation0 [shape = 'u32[]', space=smem, size = 0x4, offset = 0x4, fixed_abs, tag = 'smem constant byte address 0x4 - core index']
  #allocation1 [shape = 'u32[144,128]{1,0:T(1,128)}', space=vmem, size = 0x12000, scoped, tag = 'internal scratch']
  %s0 = inlined_call_operand.vmem [shape: f32[4,32,8], index: 0, kind: input, shape index: {}]
  %s1 = inlined_call_operand.vmem [shape: f32[1,8], index: 1, kind: input, shape index: {}]
  %s2 = inlined_call_operand.vmem [shape: f32[1,8], index: 2, kind: input, shape index: {}]
  %s3 = inlined_call_operand.vmem [shape: f32[4,32,8], index: 3, kind: output, shape index: {0}]
  %s4 = inlined_call_operand.hbm [shape: f32[4,1,8], index: 4, kind: output, shape index: {1}]
  %s5 = inlined_call_operand.hbm [shape: f32[4,1,8], index: 5, kind: output, shape index: {2}]
  %6 = xla_tuple %s3, %s4, %s5
  %s7 = sld [smem:[#allocation0]]
  $region38: #{tpu_custom_call.1} parent=0
    _
  %s9 = ssub.s32 1, %s7
  %s10 = scalar_select 0, %s9, %s7
  $region1: #{tpu_custom_call.1} parent=0
    #allocation2 [shape = 'u8[2048]{0}', space=vmem, size = 0x800, scoped, tag = 'output window, operand 1, single buffered']
    #allocation3 [shape = 's32[1]{0}', space=sflag, size = 0x4, scoped, tag = 'scoped memory for tpu_custom_call.1']
    #allocation4 [shape = 'u8[2048]{0}', space=vmem, size = 0x800, scoped, tag = 'output window, operand 2, single buffered']
    #allocation5 [shape = 's32[1]{0}', space=sflag, size = 0x4, scoped, tag = 'scoped memory for tpu_custom_call.1']
    %11 = vsyncpa [#allocation3], 0
    %12 = vsyncpa [#allocation5], 0
    // Predicated region
    $region2: #{tpu_custom_call.1} parent=1 // pred_check
      _
    $region3: #{tpu_custom_call.1} parent=1 // pred_check_branch
      %14 = sbr.rel (0) target = $region5
    $region4: #{tpu_custom_call.1} parent=1 // pred_region
      _
    $region5: #{tpu_custom_call.1} parent=1 // pred_fallthru
      _
    // Predicated region
    $region6: #{tpu_custom_call.1} parent=1 // pred_check
      _
    $region7: #{tpu_custom_call.1} parent=1 // pred_check_branch
      %16 = sbr.rel (0) target = $region9
    $region8: #{tpu_custom_call.1} parent=1 // pred_region
      _
    $region9: #{tpu_custom_call.1} parent=1 // pred_fallthru
      _
    // Predicated region
    $region10: #{tpu_custom_call.1} parent=1 // pred_check
      _
    $region11: #{tpu_custom_call.1} parent=1 // pred_check_branch
      %18 = sbr.rel (0) target = $region13
    $region12: #{tpu_custom_call.1} parent=1 // pred_region
      _
    $region13: #{tpu_custom_call.1} parent=1 // pred_fallthru
      _
    %v19 = vld [vmem:[%s0] sm:$0xff]
    %v20 = vld [vmem:[%s0 + $0x8] sm:$0xff]
    %v21 = vld [vmem:[%s0 + $0x10] sm:$0xff]
    %v22 = vld [vmem:[%s0 + $0x18] sm:$0xff]
    %v23 = vld [vmem:[%s0 + $0x20] sm:$0xff]
    %v24 = vld [vmem:[%s0 + $0x28] sm:$0xff]
    %v25 = vld [vmem:[%s0 + $0x30] sm:$0xff]
    %v26 = vld [vmem:[%s0 + $0x38] sm:$0xff]
    %v27 = vld [vmem:[%s0 + $0x40] sm:$0xff]
    %v28 = vld [vmem:[%s0 + $0x48] sm:$0xff]
    %v29 = vld [vmem:[%s0 + $0x50] sm:$0xff]
    %v30 = vld [vmem:[%s0 + $0x58] sm:$0xff]
    %v31 = vld [vmem:[%s0 + $0x60] sm:$0xff]
    %v32 = vld [vmem:[%s0 + $0x68] sm:$0xff]
    %v33 = vld [vmem:[%s0 + $0x70] sm:$0xff]
    %v34 = vld [vmem:[%s0 + $0x78] sm:$0xff]
    %vm35 = vcmask 64512
    %v36 = vsel %vm35, %v19, 0.0
    %v37 = vsel %vm35, %v20, 0.0
    %v38 = vadd.f32 %v36, %v37
    %v39 = vsel %vm35, %v21, 0.0
    %v40 = vadd.f32 %v38, %v39
    %v41 = vsel %vm35, %v22, 0.0
    %v42 = vadd.f32 %v40, %v41
    %v43 = vrot.slane %v42, 4
    %v44 = vadd.f32 %v42, %v43
    %v45 = vrot.slane %v44, 2
    %v46 = vadd.f32 %v44, %v45
    %v47 = vrot.slane %v46, 1
    %v48 = vadd.f32 %v46, %v47
    %v49 = vsel %vm35, %v23, 0.0
    %v50 = vsel %vm35, %v24, 0.0
    %v51 = vadd.f32 %v49, %v50
    %v52 = vsel %vm35, %v25, 0.0
    %v53 = vadd.f32 %v51, %v52
    %v54 = vsel %vm35, %v26, 0.0
    %v55 = vadd.f32 %v53, %v54
    %v56 = vrot.slane %v55, 4
    %v57 = vadd.f32 %v55, %v56
    %v58 = vrot.slane %v57, 2
    %v59 = vadd.f32 %v57, %v58
    %v60 = vrot.slane %v59, 1
    %v61 = vadd.f32 %v59, %v60
    %v62 = vsel %vm35, %v27, 0.0
    %v63 = vsel %vm35, %v28, 0.0
    %v64 = vadd.f32 %v62, %v63
    %v65 = vsel %vm35, %v29, 0.0
    %v66 = vadd.f32 %v64, %v65
    %v67 = vsel %vm35, %v30, 0.0
    %v68 = vadd.f32 %v66, %v67
    %v69 = vrot.slane %v68, 4
    %v70 = vadd.f32 %v68, %v69
    %v71 = vrot.slane %v70, 2
    %v72 = vadd.f32 %v70, %v71
    %v73 = vrot.slane %v72, 1
    %v74 = vadd.f32 %v72, %v73
    %v75 = vsel %vm35, %v31, 0.0
    %v76 = vsel %vm35, %v32, 0.0
    %v77 = vadd.f32 %v75, %v76
    %v78 = vsel %vm35, %v33, 0.0
    %v79 = vadd.f32 %v77, %v78
    %v80 = vsel %vm35, %v34, 0.0
    %v81 = vadd.f32 %v79, %v80
    %v82 = vrot.slane %v81, 4
    %v83 = vadd.f32 %v81, %v82
    %v84 = vrot.slane %v83, 2
    %v85 = vadd.f32 %v83, %v84
    %v86 = vrot.slane %v85, 1
    %v87 = vadd.f32 %v85, %v86
    %v88 = vrcp.pop 32.0
    %v89 = vmul.f32 %v48, %v88
    %v90 = vmul.f32 %v61, %v88
    %v91 = vmul.f32 %v74, %v88
    %v92 = vmul.f32 %v87, %v88
    %v93 = vsub.f32 %v19, %v89
    %v94 = vsub.f32 %v20, %v89
    %v95 = vsub.f32 %v21, %v89
    %v96 = vsub.f32 %v22, %v89
    %v97 = vsub.f32 %v23, %v90
    %v98 = vsub.f32 %v24, %v90
    %v99 = vsub.f32 %v25, %v90
    %v100 = vsub.f32 %v26, %v90
    %v101 = vsub.f32 %v27, %v91
    %v102 = vsub.f32 %v28, %v91
    %v103 = vsub.f32 %v29, %v91
    %v104 = vsub.f32 %v30, %v91
    %v105 = vsub.f32 %v31, %v92
    %v106 = vsub.f32 %v32, %v92
    %v107 = vsub.f32 %v33, %v92
    %v108 = vsub.f32 %v34, %v92
    %v109 = vmul.f32 %v93, %v93
    %v110 = vmul.f32 %v94, %v94
    %v111 = vmul.f32 %v95, %v95
    %v112 = vmul.f32 %v96, %v96
    %v113 = vmul.f32 %v97, %v97
    %v114 = vmul.f32 %v98, %v98
    %v115 = vmul.f32 %v99, %v99
    %v116 = vmul.f32 %v100, %v100
    %v117 = vmul.f32 %v101, %v101
    %v118 = vmul.f32 %v102, %v102
    %v119 = vmul.f32 %v103, %v103
    %v120 = vmul.f32 %v104, %v104
    %v121 = vmul.f32 %v105, %v105
    %v122 = vmul.f32 %v106, %v106
    %v123 = vmul.f32 %v107, %v107
    %v124 = vmul.f32 %v108, %v108
    %v125 = vsel %vm35, %v109, 0.0
    %v126 = vsel %vm35, %v110, 0.0
    %v127 = vadd.f32 %v125, %v126
    %v128 = vsel %vm35, %v111, 0.0
    %v129 = vadd.f32 %v127, %v128
    %v130 = vsel %vm35, %v112, 0.0
    %v131 = vadd.f32 %v129, %v130
    %v132 = vrot.slane %v131, 4
    %v133 = vadd.f32 %v131, %v132
    %v134 = vrot.slane %v133, 2
    %v135 = vadd.f32 %v133, %v134
    %v136 = vrot.slane %v135, 1
    %v137 = vadd.f32 %v135, %v136
    %v138 = vsel %vm35, %v113, 0.0
    %v139 = vsel %vm35, %v114, 0.0
    %v140 = vadd.f32 %v138, %v139
    %v141 = vsel %vm35, %v115, 0.0
    %v142 = vadd.f32 %v140, %v141
    %v143 = vsel %vm35, %v116, 0.0
    %v144 = vadd.f32 %v142, %v143
    %v145 = vrot.slane %v144, 4
    %v146 = vadd.f32 %v144, %v145
    %v147 = vrot.slane %v146, 2
    %v148 = vadd.f32 %v146, %v147
    %v149 = vrot.slane %v148, 1
    %v150 = vadd.f32 %v148, %v149
    %v151 = vsel %vm35, %v117, 0.0
    %v152 = vsel %vm35, %v118, 0.0
    %v153 = vadd.f32 %v151, %v152
    %v154 = vsel %vm35, %v119, 0.0
    %v155 = vadd.f32 %v153, %v154
    %v156 = vsel %vm35, %v120, 0.0
    %v157 = vadd.f32 %v155, %v156
    %v158 = vrot.slane %v157, 4
    %v159 = vadd.f32 %v157, %v158
    %v160 = vrot.slane %v159, 2
    %v161 = vadd.f32 %v159, %v160
    %v162 = vrot.slane %v161, 1
    %v163 = vadd.f32 %v161, %v162
    %v164 = vsel %vm35, %v121, 0.0
    %v165 = vsel %vm35, %v122, 0.0
    %v166 = vadd.f32 %v164, %v165
    %v167 = vsel %vm35, %v123, 0.0
    %v168 = vadd.f32 %v166, %v167
    %v169 = vsel %vm35, %v124, 0.0
    %v170 = vadd.f32 %v168, %v169
    %v171 = vrot.slane %v170, 4
    %v172 = vadd.f32 %v170, %v171
    %v173 = vrot.slane %v172, 2
    %v174 = vadd.f32 %v172, %v173
    %v175 = vrot.slane %v174, 1
    %v176 = vadd.f32 %v174, %v175
    %v177 = vmul.f32 %v137, %v88
    %v178 = vmul.f32 %v150, %v88
    %v179 = vmul.f32 %v163, %v88
    %v180 = vmul.f32 %v176, %v88
    %v181 = vadd.f32 %v177, 1e-05
    %v182 = vadd.f32 %v178, 1e-05
    %v183 = vadd.f32 %v179, 1e-05
    %v184 = vadd.f32 %v180, 1e-05
    %v185 = vrsqrt.pop %v181
    %v186 = vrsqrt.pop %v182
    %v187 = vrsqrt.pop %v183
    %v188 = vrsqrt.pop %v184
    %v189 = vmul.f32 %v181, %v185
    %v190 = vmul.f32 %v182, %v186
    %v191 = vmul.f32 %v183, %v187
    %v192 = vmul.f32 %v184, %v188
    %v193 = vld [vmem:[%s1] sm:$0x1]
    %v194 = vld [vmem:[%s2] sm:$0x1]
    %v195 = vmul.f32 %v185, %v193
    %v196 = vmul.f32 %v186, %v193
    %v197 = vmul.f32 %v187, %v193
    %v198 = vmul.f32 %v188, %v193
    %v199 = vmul.f32 %v89, %v195
    %v200 = vmul.f32 %v90, %v196
    %v201 = vmul.f32 %v91, %v197
    %v202 = vmul.f32 %v92, %v198
    %v203 = vsub.f32 %v194, %v199
    %v204 = vsub.f32 %v194, %v200
    %v205 = vsub.f32 %v194, %v201
    %v206 = vsub.f32 %v194, %v202
    %v207 = vlaneseq
    %v208 = vshrl.u32 %v207, 7
    %v209 = vsub.s32 0, %v208
    %v210 = vrot.slane %v195, %v209
    %v211 = vlaneseq
    %v212 = vshrl.u32 %v211, 7
    %v213 = vsub.s32 0, %v212
    %v214 = vrot.slane %v196, %v213
    %v215 = vlaneseq
    %v216 = vshrl.u32 %v215, 7
    %v217 = vsub.s32 0, %v216
    %v218 = vrot.slane %v197, %v217
    %v219 = vlaneseq
    %v220 = vshrl.u32 %v219, 7
    %v221 = vsub.s32 0, %v220
    %v222 = vrot.slane %v198, %v221
    %v223 = vmul.f32 %v19, %v210
    %v224 = vmul.f32 %v20, %v210
    %v225 = vmul.f32 %v21, %v210
    %v226 = vmul.f32 %v22, %v210
    %v227 = vmul.f32 %v23, %v214
    %v228 = vmul.f32 %v24, %v214
    %v229 = vmul.f32 %v25, %v214
    %v230 = vmul.f32 %v26, %v214
    %v231 = vmul.f32 %v27, %v218
    %v232 = vmul.f32 %v28, %v218
    %v233 = vmul.f32 %v29, %v218
    %v234 = vmul.f32 %v30, %v218
    %v235 = vmul.f32 %v31, %v222
    %v236 = vmul.f32 %v32, %v222
    %v237 = vmul.f32 %v33, %v222
    %v238 = vmul.f32 %v34, %v222
    %v243 = vlaneseq
    %v244 = vshrl.u32 %v243, 7
    %v245 = vsub.s32 0, %v244
    %v246 = vrot.slane %v203, %v245
    %v247 = vlaneseq
    %v248 = vshrl.u32 %v247, 7
    %v249 = vsub.s32 0, %v248
    %v250 = vrot.slane %v204, %v249
    %v251 = vlaneseq
    %v252 = vshrl.u32 %v251, 7
    %v253 = vsub.s32 0, %v252
    %v254 = vrot.slane %v205, %v253
    %v255 = vlaneseq
    %v256 = vshrl.u32 %v255, 7
    %v257 = vsub.s32 0, %v256
    %v258 = vrot.slane %v206, %v257
    %v263 = vadd.f32 %v223, %v246
    %v264 = vadd.f32 %v224, %v246
    %v265 = vadd.f32 %v225, %v246
    %v266 = vadd.f32 %v226, %v246
    %v267 = vadd.f32 %v227, %v250
    %v268 = vadd.f32 %v228, %v250
    %v269 = vadd.f32 %v229, %v250
    %v270 = vadd.f32 %v230, %v250
    %v271 = vadd.f32 %v231, %v254
    %v272 = vadd.f32 %v232, %v254
    %v273 = vadd.f32 %v233, %v254
    %v274 = vadd.f32 %v234, %v254
    %v275 = vadd.f32 %v235, %v258
    %v276 = vadd.f32 %v236, %v258
    %v277 = vadd.f32 %v237, %v258
    %v278 = vadd.f32 %v238, %v258
    %279 = vst.msk [vmem:[%s3] sm:$0xff] %vm35, %v263
    %280 = vst.msk [vmem:[%s3 + $0x8] sm:$0xff] %vm35, %v264
    %281 = vst.msk [vmem:[%s3 + $0x10] sm:$0xff] %vm35, %v265
    %282 = vst.msk [vmem:[%s3 + $0x18] sm:$0xff] %vm35, %v266
    %283 = vst.msk [vmem:[%s3 + $0x20] sm:$0xff] %vm35, %v267
    %284 = vst.msk [vmem:[%s3 + $0x28] sm:$0xff] %vm35, %v268
    %285 = vst.msk [vmem:[%s3 + $0x30] sm:$0xff] %vm35, %v269
    %286 = vst.msk [vmem:[%s3 + $0x38] sm:$0xff] %vm35, %v270
    %287 = vst.msk [vmem:[%s3 + $0x40] sm:$0xff] %vm35, %v271
    %288 = vst.msk [vmem:[%s3 + $0x48] sm:$0xff] %vm35, %v272
    %289 = vst.msk [vmem:[%s3 + $0x50] sm:$0xff] %vm35, %v273
    %290 = vst.msk [vmem:[%s3 + $0x58] sm:$0xff] %vm35, %v274
    %291 = vst.msk [vmem:[%s3 + $0x60] sm:$0xff] %vm35, %v275
    %292 = vst.msk [vmem:[%s3 + $0x68] sm:$0xff] %vm35, %v276
    %293 = vst.msk [vmem:[%s3 + $0x70] sm:$0xff] %vm35, %v277
    %294 = vst.msk [vmem:[%s3 + $0x78] sm:$0xff] %vm35, %v278
    %vm295 = vcmask 57344
    %296 = vst.msk [vmem:[#allocation2] sm:$0x1] %vm295, %v89
    %297 = vst.msk [vmem:[#allocation2 + $0x1] sm:$0x1] %vm295, %v90
    %298 = vst.msk [vmem:[#allocation2 + $0x2] sm:$0x1] %vm295, %v91
    %299 = vst.msk [vmem:[#allocation2 + $0x3] sm:$0x1] %vm295, %v92
    %300 = vst.msk [vmem:[#allocation4] sm:$0x1] %vm295, %v189
    %301 = vst.msk [vmem:[#allocation4 + $0x1] sm:$0x1] %vm295, %v190
    %302 = vst.msk [vmem:[#allocation4 + $0x2] sm:$0x1] %vm295, %v191
    %303 = vst.msk [vmem:[#allocation4 + $0x3] sm:$0x1] %vm295, %v192
    // Predicated region
    $region14: #{tpu_custom_call.1} parent=1 // pred_check
      _
    $region15: #{tpu_custom_call.1} parent=1 // pred_check_branch
      %305 = sbr.rel (0) target = $region17
    $region16: #{tpu_custom_call.1} parent=1 // pred_region
      _
    $region17: #{tpu_custom_call.1} parent=1 // pred_fallthru
      _
    // Predicated region
    $region18: #{tpu_custom_call.1} parent=1 // pred_check
      _
    $region19: #{tpu_custom_call.1} parent=1 // pred_check_branch
      %307 = sbr.rel (0) target = $region21
    $region20: #{tpu_custom_call.1} parent=1 // pred_region
      %s309 = ssub.s32 64, 64
      %310 = vsyncadd [#allocation3], %s309
      %s311 = sshll.u32 [#allocation2], 4
      %s312 = int_to_ptr.vmem [resolvable:$true] %s311
      %317 = dma.vmem_to_hbm [thread:$0]  %s312, 64, %s4, [#allocation3], 16, 16, 1
    $region21: #{tpu_custom_call.1} parent=1 // pred_fallthru
      _
    // Predicated region
    $region22: #{tpu_custom_call.1} parent=1 // pred_check
      _
    $region23: #{tpu_custom_call.1} parent=1 // pred_check_branch
      %319 = sbr.rel (0) target = $region25
    $region24: #{tpu_custom_call.1} parent=1 // pred_region
      %s321 = ssub.s32 64, 64
      %322 = vsyncadd [#allocation5], %s321
      %s323 = sshll.u32 [#allocation4], 4
      %s324 = int_to_ptr.vmem [resolvable:$true] %s323
      %329 = dma.vmem_to_hbm [thread:$0]  %s324, 64, %s5, [#allocation5], 16, 16, 1
    $region25: #{tpu_custom_call.1} parent=1 // pred_fallthru
      _
    // Predicated region
    $region26: #{tpu_custom_call.1} parent=1 // pred_check
      _
    $region27: #{tpu_custom_call.1} parent=1 // pred_check_branch
      %331 = sbr.rel (0) target = $region29
    $region28: #{tpu_custom_call.1} parent=1 // pred_region
      _
    $region29: #{tpu_custom_call.1} parent=1 // pred_fallthru
      _
    // Predicated region
    $region30: #{tpu_custom_call.1} parent=1 // pred_check
      _
    $region31: #{tpu_custom_call.1} parent=1 // pred_check_branch
      %333 = sbr.rel (0) target = $region33
    $region32: #{tpu_custom_call.1} parent=1 // pred_region
      %334 = dma.done [#allocation3], 64
    $region33: #{tpu_custom_call.1} parent=1 // pred_fallthru
      _
    // Predicated region
    $region34: #{tpu_custom_call.1} parent=1 // pred_check
      _
    $region35: #{tpu_custom_call.1} parent=1 // pred_check_branch
      %336 = sbr.rel (0) target = $region37
    $region36: #{tpu_custom_call.1} parent=1 // pred_region
      %337 = dma.done [#allocation5], 64
    $region37: #{tpu_custom_call.1} parent=1 // pred_fallthru
      _
    %338 = vsyncpa [#allocation3], 1
    %339 = vsyncpa [#allocation5], 1

</llo_original>
